<compile_context>
chip_gen: v5e
topology: v5e:2x2
jax: 0.10.0
libtpu: 0.0.40
codegen_flags: <defaults>
</compile_context>

<pallas_src>
import functools

import jax
import jax.numpy as jnp
from jax.experimental import pallas as pl
from jax.experimental.pallas import tpu as pltpu


def se_blk_kernel(x_ref, w1t_ref, b1_ref, w2t_ref, b2_ref, o_ref, *, inv_len):
    # x_ref/o_ref: (1, C, L) for the current batch row.
    # w1t: (C, C//r)  b1: (1, C//r)  w2t: (C//r, C)  b2: (1, C) — resident across steps.
    x = x_ref[...]                                              # keep input dtype

    # Squeeze: global average pool over L.  f32 accumulation; the f32 view only lives
    # inside the reduction (no long-lived f32 copy of the whole tile).
    z = jnp.sum(x.astype(jnp.float32), axis=-1) * inv_len       # (1, C)

    # Excite: Linear -> ReLU -> Linear -> Sigmoid.  These matmuls are tiny and fully
    # hidden under the memory-bound rescale; accumulate in f32 on the MXU.
    h = jnp.dot(z.astype(w1t_ref.dtype), w1t_ref[...],
                preferred_element_type=jnp.float32) + b1_ref[...]
    h = jnp.maximum(h, 0.0)
    s = jnp.dot(h.astype(w2t_ref.dtype), w2t_ref[...],
                preferred_element_type=jnp.float32) + b2_ref[...]
    s = jax.nn.sigmoid(s)                                       # (1, C), f32 (EUP exp)

    # Channel re-scale broadcast over L.  Cast the C scale values to x's dtype rather
    # than upcasting the whole C*L tile to f32.
    o_ref[...] = (x * s[:, :, None].astype(x.dtype)).astype(o_ref.dtype)


def se_blk(x, w1, b1, w2, b2, *, vmem_limit_bytes=None):
    """SE block forward. x: (B, C, L); w1: (C//r, C); b1: (C//r,); w2: (C, C//r); b2: (C,)."""
    B, C, L = x.shape
    Cr = w1.shape[0]
    dtype = x.dtype
    itemsize = jnp.dtype(dtype).itemsize

    # NOTE: the lane (last) dim of each block is L.  For production shapes keep
    # L % 128 == 0 in the caller's layout so the rescale store is a dense vst rather
    # than a masked partial store; padding here in the wrapper would add more HBM
    # traffic (pad + slice copies) than it saves for this memory-bound op.
    # TODO(synk): if large, unaligned L becomes common, pre-pad x upstream of this call.

    # Pre-transpose weights so the kernel does plain (1,K)x(K,N) matmuls; keep weights
    # in the activation dtype (no forced f32 upcast of the weight DMA), biases in f32.
    w1t = jnp.asarray(w1, dtype).T                 # (C, Cr)
    w2t = jnp.asarray(w2, dtype).T                 # (Cr, C)
    b1r = jnp.asarray(b1, jnp.float32).reshape(1, Cr)
    b2r = jnp.asarray(b2, jnp.float32).reshape(1, C)

    # Explicit VMEM budget: 2x double-buffered input tile + 2x output tile + resident
    # weights/biases + slack.  Clamped so it also fits v7x's 64 MiB physical VMEM.
    tile_bytes = C * L * itemsize
    weight_bytes = (C * Cr + Cr * C) * itemsize + (Cr + C) * 4
    needed = 4 * tile_bytes + weight_bytes + (1 << 20)
    if vmem_limit_bytes is None:
        vmem_limit_bytes = int(min(max(needed, 4 << 20), 64 << 20))

    # Advisory cost hint: this op is memory-bound (read x, write s*x).
    cost = pl.CostEstimate(
        flops=4 * B * C * Cr + 2 * B * C * L,      # two tiny matmuls + pool + rescale
        transcendentals=B * C,                     # sigmoid
        bytes_accessed=2 * B * C * L * itemsize + weight_bytes,
    )

    kernel = functools.partial(se_blk_kernel, inv_len=float(1.0 / L))

    return pl.pallas_call(
        kernel,
        out_shape=jax.ShapeDtypeStruct((B, C, L), dtype),
        grid=(B,),
        in_specs=[
            pl.BlockSpec((1, C, L), lambda b: (b, 0, 0)),   # x: one batch row per step
            pl.BlockSpec((C, Cr), lambda b: (0, 0)),        # weights/biases: resident
            pl.BlockSpec((1, Cr), lambda b: (0, 0)),
            pl.BlockSpec((Cr, C), lambda b: (0, 0)),
            pl.BlockSpec((1, C), lambda b: (0, 0)),
        ],
        out_specs=pl.BlockSpec((1, C, L), lambda b: (b, 0, 0)),
        compiler_params=pltpu.CompilerParams(
            dimension_semantics=("parallel",),              # shard B across TCs (v7x)
            vmem_limit_bytes=vmem_limit_bytes,
        ),
        cost_estimate=cost,
    )(x, w1t, b1r, w2t, b2r)


if __name__ == "__main__":
    # Small shapes consistent with the module: batch=2, in_c=4, seq len=16, r=2.
    B, C, L, r = 2, 4, 16, 2

    key = jax.random.PRNGKey(0)
    kx, kw1, kw2 = jax.random.split(key, 3)

    x = jax.random.normal(kx, (B, C, L), dtype=jnp.float32)

    # Deterministic init mirroring init_net(): uniform(-0.1, 0.1) weights, zero biases.
    initrange = 0.1
    w1 = jax.random.uniform(kw1, (C // r, C), minval=-initrange, maxval=initrange,
                            dtype=jnp.float32)
    b1 = jnp.zeros((C // r,), jnp.float32)
    w2 = jax.random.uniform(kw2, (C, C // r), minval=-initrange, maxval=initrange,
                            dtype=jnp.float32)
    b2 = jnp.zeros((C,), jnp.float32)

    out = se_blk(x, w1, b1, w2, b2)
    jax.block_until_ready(out)

    # Pure-JAX reference (mirrors the PyTorch SE_blk forward).
    z = jnp.mean(x, axis=-1)
    h = jnp.maximum(z @ w1.T + b1, 0.0)
    s = jax.nn.sigmoid(h @ w2.T + b2)
    ref = s[:, :, None] * x
    assert jnp.allclose(out, ref, atol=1e-5, rtol=1e-5)

    print("KERNEL_OK")
</pallas_src>

<mosaic_0001>
module attributes {stable_mosaic.version = 11 : i64} {
  func.func @se_blk_kernel(%arg0: i32, %arg1: memref<1x4x16xf32, #tpu.memory_space<vmem>>, %arg2: memref<4x2xf32, #tpu.memory_space<vmem>>, %arg3: memref<1x2xf32, #tpu.memory_space<vmem>>, %arg4: memref<2x4xf32, #tpu.memory_space<vmem>>, %arg5: memref<1x4xf32, #tpu.memory_space<vmem>>, %arg6: memref<1x4x16xf32, #tpu.memory_space<vmem>>) attributes {dimension_semantics = [#tpu.dimension_semantics<parallel>], iteration_bounds = array<i64: 2>, scalar_prefetch = 0 : i64, scratch_operands = 0 : i64, tpu.core_type = #tpu.core_type<tc>, window_params = [{transform_indices = @transform_0, window_bounds = array<i64: 1, 4, 16>}, {pipeline_mode = #tpu.pipeline_mode<synchronous>, transform_indices = @transform_1, window_bounds = array<i64: 4, 2>}, {pipeline_mode = #tpu.pipeline_mode<synchronous>, transform_indices = @transform_2, window_bounds = array<i64: 1, 2>}, {pipeline_mode = #tpu.pipeline_mode<synchronous>, transform_indices = @transform_3, window_bounds = array<i64: 2, 4>}, {pipeline_mode = #tpu.pipeline_mode<synchronous>, transform_indices = @transform_4, window_bounds = array<i64: 1, 4>}, {transform_indices = @transform_5, window_bounds = array<i64: 1, 4, 16>}]} {
    %c0 = arith.constant 0 : index
    %c0_0 = arith.constant 0 : index
    %c0_1 = arith.constant 0 : index
    %0 = vector.load %arg1[%c0, %c0_0, %c0_1] : memref<1x4x16xf32, #tpu.memory_space<vmem>>, vector<1x4x16xf32>
    %cst = arith.constant dense<0.000000e+00> : vector<1x4xf32>
    %1 = vector.multi_reduction <add>, %0, %cst [2] : vector<1x4x16xf32> to vector<1x4xf32>
    %cst_2 = arith.constant 6.250000e-02 : f32
    %2 = vector.broadcast %cst_2 : f32 to vector<1x4xf32>
    %3 = arith.mulf %1, %2 : vector<1x4xf32>
    %c0_3 = arith.constant 0 : index
    %c0_4 = arith.constant 0 : index
    %4 = vector.load %arg2[%c0_3, %c0_4] : memref<4x2xf32, #tpu.memory_space<vmem>>, vector<4x2xf32>
    %cst_5 = arith.constant dense<0.000000e+00> : vector<1x2xf32>
    %5 = tpu.matmul %3, %4, %cst_5 {dimension_numbers = #tpu.dot_dimension_numbers<[1], [0], [0], [1], [0, 0, 1, 1], [], []>} : vector<1x4xf32>, vector<4x2xf32>, vector<1x2xf32> -> vector<1x2xf32>
    %c0_6 = arith.constant 0 : index
    %c0_7 = arith.constant 0 : index
    %6 = vector.load %arg3[%c0_6, %c0_7] : memref<1x2xf32, #tpu.memory_space<vmem>>, vector<1x2xf32>
    %7 = arith.addf %5, %6 : vector<1x2xf32>
    %cst_8 = arith.constant 0.000000e+00 : f32
    %8 = vector.broadcast %cst_8 : f32 to vector<1x2xf32>
    %9 = arith.maximumf %7, %8 : vector<1x2xf32>
    %c0_9 = arith.constant 0 : index
    %c0_10 = arith.constant 0 : index
    %10 = vector.load %arg4[%c0_9, %c0_10] : memref<2x4xf32, #tpu.memory_space<vmem>>, vector<2x4xf32>
    %cst_11 = arith.constant dense<0.000000e+00> : vector<1x4xf32>
    %11 = tpu.matmul %9, %10, %cst_11 {dimension_numbers = #tpu.dot_dimension_numbers<[1], [0], [0], [1], [0, 0, 1, 1], [], []>} : vector<1x2xf32>, vector<2x4xf32>, vector<1x4xf32> -> vector<1x4xf32>
    %c0_12 = arith.constant 0 : index
    %c0_13 = arith.constant 0 : index
    %12 = vector.load %arg5[%c0_12, %c0_13] : memref<1x4xf32, #tpu.memory_space<vmem>>, vector<1x4xf32>
    %13 = arith.addf %11, %12 : vector<1x4xf32>
    %14 = arith.negf %13 : vector<1x4xf32>
    %15 = math.exp %14 : vector<1x4xf32>
    %cst_14 = arith.constant 1.000000e+00 : f32
    %16 = vector.broadcast %cst_14 : f32 to vector<1x4xf32>
    %17 = arith.addf %16, %15 : vector<1x4xf32>
    %18 = arith.divf %16, %17 : vector<1x4xf32>
    %19 = vector.shape_cast %18 : vector<1x4xf32> to vector<1x4x1xf32>
    %20 = vector.broadcast %19 : vector<1x4x1xf32> to vector<1x4x16xf32>
    %21 = arith.mulf %0, %20 : vector<1x4x16xf32>
    %c0_15 = arith.constant 0 : index
    %c0_16 = arith.constant 0 : index
    %c0_17 = arith.constant 0 : index
    %22 = vector.load %arg6[%c0_15, %c0_16, %c0_17] : memref<1x4x16xf32, #tpu.memory_space<vmem>>, vector<1x4x16xf32>
    tpu.vector_store %arg6[%c0_15, %c0_16, %c0_17], %21 {strides = array<i32>} : memref<1x4x16xf32, #tpu.memory_space<vmem>>, vector<1x4x16xf32>,
    return
  }
  func.func @transform_0(%arg0: i32) -> (i32, i32, i32) {
    %c0_i32 = arith.constant 0 : i32
    %c0_i32_0 = arith.constant 0 : i32
    %c0_i32_1 = arith.constant 0 : i32
    return %arg0, %c0_i32, %c0_i32_0 : i32, i32, i32
  }
  func.func @transform_1(%arg0: i32) -> (i32, i32) {
    %c0_i32 = arith.constant 0 : i32
    %c0_i32_0 = arith.constant 0 : i32
    %c0_i32_1 = arith.constant 0 : i32
    return %c0_i32, %c0_i32_0 : i32, i32
  }
  func.func @transform_2(%arg0: i32) -> (i32, i32) {
    %c0_i32 = arith.constant 0 : i32
    %c0_i32_0 = arith.constant 0 : i32
    %c0_i32_1 = arith.constant 0 : i32
    return %c0_i32, %c0_i32_0 : i32, i32
  }
  func.func @transform_3(%arg0: i32) -> (i32, i32) {
    %c0_i32 = arith.constant 0 : i32
    %c0_i32_0 = arith.constant 0 : i32
    %c0_i32_1 = arith.constant 0 : i32
    return %c0_i32, %c0_i32_0 : i32, i32
  }
  func.func @transform_4(%arg0: i32) -> (i32, i32) {
    %c0_i32 = arith.constant 0 : i32
    %c0_i32_0 = arith.constant 0 : i32
    %c0_i32_1 = arith.constant 0 : i32
    return %c0_i32, %c0_i32_0 : i32, i32
  }
  func.func @transform_5(%arg0: i32) -> (i32, i32, i32) {
    %c0_i32 = arith.constant 0 : i32
    %c0_i32_0 = arith.constant 0 : i32
    %c0_i32_1 = arith.constant 0 : i32
    return %arg0, %c0_i32, %c0_i32_0 : i32, i32, i32
  }
}

</mosaic_0001>

<llo_original>
// kernel: tpu_custom_call.1
$region0: #{tpu_custom_call.1}
  #allocation0 [shape = 'u32[]', space=smem, size = 0x4, offset = 0x4, fixed_abs, tag = 'smem constant byte address 0x4 - core index']
  #allocation1 [shape = 'u32[72,128]{1,0:T(1,128)}', space=vmem, size = 0x9000, scoped, tag = 'internal scratch']
  %s0 = inlined_call_operand.hbm [shape: f32[2,4,16], index: 0, kind: input, shape index: {}]
  %s1 = inlined_call_operand.vmem [shape: f32[4,2], index: 1, kind: input, shape index: {}]
  %s2 = inlined_call_operand.vmem [shape: f32[1,2], index: 2, kind: input, shape index: {}]
  %s3 = inlined_call_operand.vmem [shape: f32[2,4], index: 3, kind: input, shape index: {}]
  %s4 = inlined_call_operand.vmem [shape: f32[1,4], index: 4, kind: input, shape index: {}]
  %s5 = inlined_call_operand.hbm [shape: f32[2,4,16], index: 5, kind: output, shape index: {}]
  %s6 = sld [smem:[#allocation0]]
  $region57: #{tpu_custom_call.1} parent=0
    _
  %s8 = ssub.s32 1, %s6
  %s9 = scalar_select 0, %s8, %s6
  $region1: #{tpu_custom_call.1} parent=0
    #allocation2 [shape = 'u8[4096]{0}', space=vmem, size = 0x1000, scoped, tag = 'input window, operand 0']
    #allocation3 [shape = 's32[2]{0}', space=sflag, size = 0x8, scoped, tag = 'scoped memory for tpu_custom_call.1']
    #allocation4 [shape = 's32[2]{0}', space=sflag, size = 0x8, scoped, tag = 'scoped memory for tpu_custom_call.1']
    #allocation5 [shape = 'u8[4096]{0}', space=vmem, size = 0x1000, scoped, tag = 'output window, operand 0']
    %10 = vsyncpa [#allocation3], 0
    %s11 = scalar_lea.sflag [#allocation3], 1
    %12 = vsyncpa %s11, 0
    %13 = vsyncpa [#allocation4], 0
    %s14 = scalar_lea.sflag [#allocation4], 1
    %15 = vsyncpa %s14, 0
    loop: start=0, step=1, limit=4
    $region2: #{tpu_custom_call.1} parent=1 // loop_pre_header
      _
    $region3: #{tpu_custom_call.1} parent=1 // loop_header
      %s17 = sphi 0, %s21
      %p18 = scmp.ge.s32.totalorder %s17, 4
      %s27 = sphi 0, %s29
      %s30 = sphi 0, %s27
      %s31 = sphi 0, %s30
      %s47 = sphi 0, %s31
      %s51 = sphi 0, %s51
      %s53 = sphi 0, %s51
      %s54 = sphi 0, %s53
      %s68 = sphi 0, %s54
      %s72 = sphi 0, %s72
      %s74 = sphi 0, %s72
      %s75 = sphi 0, %s74
      %s89 = sphi 0, %s75
      %s93 = sphi 0, %s93
      %s95 = sphi 0, %s93
      %s96 = sphi 0, %s95
      %s110 = sphi 0, %s96
      %s114 = sphi 0, %s114
      %s116 = sphi 0, %s114
      %s117 = sphi 0, %s116
      %s131 = sphi 0, %s117
      %s137 = sphi 0, %s139
      %s140 = sphi 0, %s137
      %s141 = sphi 0, %s140
      %s157 = sphi 0, %s141
    $region4: #{tpu_custom_call.1} parent=1 // loop_header_branch
      %20 = sbr.rel (%p18) target = $region8
    $region5: #{tpu_custom_call.1} parent=1 // loop_body
      %s22 = ssub.s32 %s17, 1
      %s23 = ssub.s32 %s17, 2
      %s24 = sadd.s32 %s17, 1
      %s25 = ssub.s32 %s17, %s24
      %p26 = scmp.eq.s32.totalorder %s25, 0
      %s28 = sadd.s32 %s27, 1
      %s29 = scalar_select %p26, %s27, %s28
      %p32 = pneg %p26
      %p33 = scmp.eq.s32.totalorder %s17, 1
      %p34 = por %p32, %p33
      %p35 = scmp.ne.s32.totalorder %s27, %s30
      %p36 = scmp.eq.s32.totalorder %s17, 0
      %p37 = por %p35, %p36
      %p38 = scmp.ne.s32.totalorder %s27, %s30
      %p39 = scmp.eq.s32.totalorder %s22, 1
      %p40 = por %p38, %p39
      %p41 = scmp.ne.s32.totalorder %s30, %s31
      %p42 = scmp.eq.s32.totalorder %s22, 0
      %p43 = por %p41, %p42
      %p44 = scmp.ne.s32.totalorder %s30, %s31
      %p45 = scmp.eq.s32.totalorder %s23, 1
      %p46 = por %p44, %p45
      %p48 = scmp.ne.s32.totalorder %s31, %s47
      %p49 = scmp.eq.s32.totalorder %s23, 0
      %p50 = por %p48, %p49
      %s52 = sadd.s32 %s51, 1
      %p55 = scmp.eq.s32.totalorder %s17, 1
      %p56 = scmp.ne.s32.totalorder %s51, %s53
      %p57 = scmp.eq.s32.totalorder %s17, 0
      %p58 = por %p56, %p57
      %p59 = scmp.ne.s32.totalorder %s51, %s53
      %p60 = scmp.eq.s32.totalorder %s22, 1
      %p61 = por %p59, %p60
      %p62 = scmp.ne.s32.totalorder %s53, %s54
      %p63 = scmp.eq.s32.totalorder %s22, 0
      %p64 = por %p62, %p63
      %p65 = scmp.ne.s32.totalorder %s53, %s54
      %p66 = scmp.eq.s32.totalorder %s23, 1
      %p67 = por %p65, %p66
      %p69 = scmp.ne.s32.totalorder %s54, %s68
      %p70 = scmp.eq.s32.totalorder %s23, 0
      %p71 = por %p69, %p70
      %s73 = sadd.s32 %s72, 1
      %p76 = scmp.eq.s32.totalorder %s17, 1
      %p77 = scmp.ne.s32.totalorder %s72, %s74
      %p78 = scmp.eq.s32.totalorder %s17, 0
      %p79 = por %p77, %p78
      %p80 = scmp.ne.s32.totalorder %s72, %s74
      %p81 = scmp.eq.s32.totalorder %s22, 1
      %p82 = por %p80, %p81
      %p83 = scmp.ne.s32.totalorder %s74, %s75
      %p84 = scmp.eq.s32.totalorder %s22, 0
      %p85 = por %p83, %p84
      %p86 = scmp.ne.s32.totalorder %s74, %s75
      %p87 = scmp.eq.s32.totalorder %s23, 1
      %p88 = por %p86, %p87
      %p90 = scmp.ne.s32.totalorder %s75, %s89
      %p91 = scmp.eq.s32.totalorder %s23, 0
      %p92 = por %p90, %p91
      %s94 = sadd.s32 %s93, 1
      %p97 = scmp.eq.s32.totalorder %s17, 1
      %p98 = scmp.ne.s32.totalorder %s93, %s95
      %p99 = scmp.eq.s32.totalorder %s17, 0
      %p100 = por %p98, %p99
      %p101 = scmp.ne.s32.totalorder %s93, %s95
      %p102 = scmp.eq.s32.totalorder %s22, 1
      %p103 = por %p101, %p102
      %p104 = scmp.ne.s32.totalorder %s95, %s96
      %p105 = scmp.eq.s32.totalorder %s22, 0
      %p106 = por %p104, %p105
      %p107 = scmp.ne.s32.totalorder %s95, %s96
      %p108 = scmp.eq.s32.totalorder %s23, 1
      %p109 = por %p107, %p108
      %p111 = scmp.ne.s32.totalorder %s96, %s110
      %p112 = scmp.eq.s32.totalorder %s23, 0
      %p113 = por %p111, %p112
      %s115 = sadd.s32 %s114, 1
      %p118 = scmp.eq.s32.totalorder %s17, 1
      %p119 = scmp.ne.s32.totalorder %s114, %s116
      %p120 = scmp.eq.s32.totalorder %s17, 0
      %p121 = por %p119, %p120
      %p122 = scmp.ne.s32.totalorder %s114, %s116
      %p123 = scmp.eq.s32.totalorder %s22, 1
      %p124 = por %p122, %p123
      %p125 = scmp.ne.s32.totalorder %s116, %s117
      %p126 = scmp.eq.s32.totalorder %s22, 0
      %p127 = por %p125, %p126
      %p128 = scmp.ne.s32.totalorder %s116, %s117
      %p129 = scmp.eq.s32.totalorder %s23, 1
      %p130 = por %p128, %p129
      %p132 = scmp.ne.s32.totalorder %s117, %s131
      %p133 = scmp.eq.s32.totalorder %s23, 0
      %p134 = por %p132, %p133
      %s135 = ssub.s32 %s17, %s24
      %p136 = scmp.eq.s32.totalorder %s135, 0
      %s138 = sadd.s32 %s137, 1
      %s139 = scalar_select %p136, %s137, %s138
      %p142 = pneg %p136
      %p143 = scmp.eq.s32.totalorder %s17, 1
      %p144 = por %p142, %p143
      %p145 = scmp.ne.s32.totalorder %s137, %s140
      %p146 = scmp.eq.s32.totalorder %s17, 0
      %p147 = por %p145, %p146
      %p148 = scmp.ne.s32.totalorder %s137, %s140
      %p149 = scmp.eq.s32.totalorder %s22, 1
      %p150 = por %p148, %p149
      %p151 = scmp.ne.s32.totalorder %s140, %s141
      %p152 = scmp.eq.s32.totalorder %s22, 0
      %p153 = por %p151, %p152
      %p154 = scmp.ne.s32.totalorder %s140, %s141
      %p155 = scmp.eq.s32.totalorder %s23, 1
      %p156 = por %p154, %p155
      %p158 = scmp.ne.s32.totalorder %s141, %s157
      %p159 = scmp.eq.s32.totalorder %s23, 0
      %p160 = por %p158, %p159
      %p161 = scmp.le.s32.totalorder 1, %s17
      %p162 = scmp.lt.s32.totalorder %s17, 3
      %p163 = pnand %p161, %p162
      %p164 = pneg %p163
      // Predicated region
      $region9: #{tpu_custom_call.1} parent=5 // pred_check
        _
      $region10: #{tpu_custom_call.1} parent=5 // pred_check_branch
        %166 = sbr.rel (%p163) target = $region12
      $region11: #{tpu_custom_call.1} parent=5 // pred_region
        %s167 = ssub.s32 %s17, 1
        // Predicated region
        $region13: #{tpu_custom_call.1} parent=11 // pred_check
          %p168 = pneg %p64
        $region14: #{tpu_custom_call.1} parent=11 // pred_check_branch
          %170 = sbr.rel (%p168) target = $region16
        $region15: #{tpu_custom_call.1} parent=11 // pred_region
          _
        $region16: #{tpu_custom_call.1} parent=11 // pred_fallthru
          _
        // Predicated region
        $region17: #{tpu_custom_call.1} parent=11 // pred_check
          %p171 = pneg %p85
        $region18: #{tpu_custom_call.1} parent=11 // pred_check_branch
          %173 = sbr.rel (%p171) target = $region20
        $region19: #{tpu_custom_call.1} parent=11 // pred_region
          _
        $region20: #{tpu_custom_call.1} parent=11 // pred_fallthru
          _
        // Predicated region
        $region21: #{tpu_custom_call.1} parent=11 // pred_check
          %p174 = pneg %p106
        $region22: #{tpu_custom_call.1} parent=11 // pred_check_branch
          %176 = sbr.rel (%p174) target = $region24
        $region23: #{tpu_custom_call.1} parent=11 // pred_region
          _
        $region24: #{tpu_custom_call.1} parent=11 // pred_fallthru
          _
        // Predicated region
        $region25: #{tpu_custom_call.1} parent=11 // pred_check
          %p177 = pneg %p127
        $region26: #{tpu_custom_call.1} parent=11 // pred_check_branch
          %179 = sbr.rel (%p177) target = $region28
        $region27: #{tpu_custom_call.1} parent=11 // pred_region
          _
        $region28: #{tpu_custom_call.1} parent=11 // pred_fallthru
          _
      $region12: #{tpu_custom_call.1} parent=5 // pred_fallthru
        _
      %p180 = scmp.lt.s32.totalorder %s17, 2
      // Predicated region
      $region29: #{tpu_custom_call.1} parent=5 // pred_check
        %p181 = pneg %p180
      $region30: #{tpu_custom_call.1} parent=5 // pred_check_branch
        %183 = sbr.rel (%p181) target = $region32
      $region31: #{tpu_custom_call.1} parent=5 // pred_region
        // Predicated region
        $region33: #{tpu_custom_call.1} parent=31 // pred_check
          %p184 = pneg %p37
        $region34: #{tpu_custom_call.1} parent=31 // pred_check_branch
          %186 = sbr.rel (%p184) target = $region36
        $region35: #{tpu_custom_call.1} parent=31 // pred_region
          %s187 = sand.u32 %s27, 1
          %s188 = scalar_lea.sflag [#allocation3], %s187
          %s189 = sand.u32 %s27, 1
          %s190 = smul.addr %s189, 4
          %s191 = scalar_lea.vmem [#allocation2], %s190
          %193 = vsyncadd %s188, 0
          %s194 = smul.addr %s17, 4
          %s195 = scalar_lea.hbm %s0, %s194
          %s197 = sshll.u32 %s195, 4
          %s198 = int_to_ptr.hbm [resolvable:$true] %s197
          %s199 = sshll.u32 %s191, 4
          %s200 = int_to_ptr.vmem [resolvable:$true] %s199
          %202 = dma.hbm_to_vmem [thread:$0]  %s198, 64, %s200, %s188
        $region36: #{tpu_custom_call.1} parent=31 // pred_fallthru
          _
      $region32: #{tpu_custom_call.1} parent=5 // pred_fallthru
        _
      %p203 = scmp.le.s32.totalorder 1, %s17
      %p204 = scmp.lt.s32.totalorder %s17, 3
      %p205 = pnand %p203, %p204
      %p206 = pneg %p205
      // Predicated region
      $region37: #{tpu_custom_call.1} parent=5 // pred_check
        _
      $region38: #{tpu_custom_call.1} parent=5 // pred_check_branch
        %208 = sbr.rel (%p205) target = $region40
      $region39: #{tpu_custom_call.1} parent=5 // pred_region
        %s209 = ssub.s32 %s17, 1
        %s210 = sand.u32 %s30, 1
        %s211 = scalar_lea.sflag [#allocation3], %s210
        %s212 = sand.u32 %s30, 1
        %s213 = smul.addr %s212, 4
        %s214 = scalar_lea.vmem [#allocation2], %s213
        // Predicated region
        $region41: #{tpu_custom_call.1} parent=39 // pred_check
          %p215 = pneg %p43
        $region42: #{tpu_custom_call.1} parent=39 // pred_check_branch
          %217 = sbr.rel (%p215) target = $region44
        $region43: #{tpu_custom_call.1} parent=39 // pred_region
          %219 = dma.done %s211, 64
        $region44: #{tpu_custom_call.1} parent=39 // pred_fallthru
          _
        %s220 = sand.u32 %s30, 1
        %s221 = scalar_lea.sflag [#allocation3], %s220
        %s222 = sand.u32 %s30, 1
        %s223 = smul.addr %s222, 4
        %s224 = scalar_lea.vmem [#allocation2], %s223
        %p225 = pneg %p43
        %p226 = pneg %p40
        %p227 = pneg %p64
        %p228 = pneg %p61
        %p229 = pneg %p85
        %p230 = pneg %p82
        %p231 = pneg %p106
        %p232 = pneg %p103
        %p233 = pneg %p127
        %p234 = pneg %p124
        %p235 = pneg %p153
        %p236 = pneg %p150
        %s237 = sand.u32 %s140, 1
        %s238 = scalar_lea.sflag [#allocation4], %s237
        %s239 = sand.u32 %s140, 1
        %s240 = smul.addr %s239, 4
        %s241 = scalar_lea.vmem [#allocation5], %s240
        %v242 = vld [vmem:[%s214] sm:$0xf]
        %vm243 = vcmask 125952
        %v244 = vsel %vm243, %v242, 0.0
        %245 = vadd.xlane.f32.xlu0 %v244
        %v246 = vpop.xlane.xlu0 %245
        %v247 = vmul.f32 %v246, 0.0625
        %v248 = vld [vmem:[%s1] sm:$0xf]
        %v249 = vld [vmem:[%s2] sm:$0x1]
        %v251 = vlaneseq
        %v252 = vand.u32 %v251, 127
        %v253 = vperm.slane %v247, %v252
        %vm254 = vcmask 31744
        %v255 = vsel %vm254, %v253, 0
        %vm257 = vcmask 1043456
        %v259 = vsel %vm257, %v248, 0
        %261 = vmatpush.msra.mxu0 0.0
        %262 = vmatpush.msra.mxu0 0.0
        %263 = vmatpush.msra.mxu0 0.0
        %264 = vmatpush.msra.mxu0 0.0
        %265 = vmatpush.msra.mxu0 0.0
        %266 = vmatpush.msra.mxu0 0.0
        %267 = vmatpush.msra.mxu0 0.0
        %268 = vmatpush.msra.mxu0 0.0
        %269 = vmatpush.msra.mxu0 0.0
        %270 = vmatpush.msra.mxu0 0.0
        %271 = vmatpush.msra.mxu0 0.0
        %272 = vmatpush.msra.mxu0 0.0
        %273 = vmatpush.msra.mxu0 0.0
        %274 = vmatpush.msra.mxu0 0.0
        %275 = vmatpush.msra.mxu0 0.0
        %276 = vmatpush.msra.mxu0 %v259
        %277 = vmatmul.f32.gmra.mxu0 %v255
        %v278 = vpop.f32.mrf.mxu0
        %v279 = vadd.f32 %v249, %v278
        %280 = vdwg.mxu0
        %v281 = vmax.f32 %v279, 0.0
        %v282 = vld [vmem:[%s3] sm:$0x3]
        %v283 = vld [vmem:[%s4] sm:$0x1]
        %vm284 = vcmask 15360
        %v286 = vsel %vm284, %v281, 0
        %vm288 = vcmask 1041408
        %v290 = vsel %vm288, %v282, 0
        %292 = vmatpush.msra.mxu0 0.0
        %293 = vmatpush.msra.mxu0 0.0
        %294 = vmatpush.msra.mxu0 0.0
        %295 = vmatpush.msra.mxu0 0.0
        %296 = vmatpush.msra.mxu0 0.0
        %297 = vmatpush.msra.mxu0 0.0
        %298 = vmatpush.msra.mxu0 0.0
        %299 = vmatpush.msra.mxu0 0.0
        %300 = vmatpush.msra.mxu0 0.0
        %301 = vmatpush.msra.mxu0 0.0
        %302 = vmatpush.msra.mxu0 0.0
        %303 = vmatpush.msra.mxu0 0.0
        %304 = vmatpush.msra.mxu0 0.0
        %305 = vmatpush.msra.mxu0 0.0
        %306 = vmatpush.msra.mxu0 0.0
        %307 = vmatpush.msra.mxu0 %v290
        %308 = vmatmul.f32.gmra.mxu0 %v286
        %v309 = vpop.f32.mrf.mxu0
        %v310 = vadd.f32 %v283, %v309
        %311 = vdwg.mxu0
        %v312 = vxor.u32 %v310, 2147483648
        %v313 = vmul.f32 %v312, 1.442695
        %v314 = vpow.pop %v313
        %v315 = vadd.f32 %v314, 1.0
        %v316 = vrcp.pop %v315
        %v317 = vmul.f32 %v315, %v316
        %v318 = vsub.f32 1.0, %v317
        %v319 = vmul.f32 %v316, %v318
        %v320 = vadd.f32 %v316, %v319
        %vm321 = vweird.f32 %v315
        %vm322 = vweird.f32 %v316
        %vm323 = vmor %vm321, %vm322
        %v324 = vsel %vm323, %v316, %v320
        %v325 = vand.u32 2147483647, %v315
        %vm326 = vcmp.eq.f32.partialorder %v325, 8.507059e+37
        %v327 = vand.u32 %v315, 2147483648
        %v328 = vor.u32 1.1754944e-38, %v327
        %v329 = vsel %vm326, %v328, %v324
        %v330 = vmul.f32 1.0, %v329
        %v331 = vperm.slane %v330, 0
        %v332 = vlaneseq
        %v333 = vshrl.u32 %v332, 7
        %335 = vset.pattern.permute.xlu0 %v333
        %336 = vperm.xlu0 %335, %v331
        %v337 = vpop.permute.xlu0 %336
        %v338 = vmul.f32 %v242, %v337
        %339 = vst.msk [vmem:[%s241] sm:$0xf] %vm243, %v338
        %s340 = sand.u32 %s140, 1
        %s341 = scalar_lea.sflag [#allocation4], %s340
        %s342 = sand.u32 %s140, 1
        %s343 = smul.addr %s342, 4
        %s344 = scalar_lea.vmem [#allocation5], %s343
        // Predicated region
        $region45: #{tpu_custom_call.1} parent=39 // pred_check
          %p345 = pneg %p150
        $region46: #{tpu_custom_call.1} parent=39 // pred_check_branch
          %347 = sbr.rel (%p345) target = $region48
        $region47: #{tpu_custom_call.1} parent=39 // pred_region
          %349 = vsyncadd %s341, 0
          %s350 = smul.addr %s22, 4
          %s351 = scalar_lea.hbm %s5, %s350
          %s353 = sshll.u32 %s344, 4
          %s354 = int_to_ptr.vmem [resolvable:$true] %s353
          %s355 = sshll.u32 %s351, 4
          %s356 = int_to_ptr.hbm [resolvable:$true] %s355
          %358 = dma.vmem_to_hbm [thread:$0]  %s354, 64, %s356, %s341
        $region48: #{tpu_custom_call.1} parent=39 // pred_fallthru
          _
      $region40: #{tpu_custom_call.1} parent=5 // pred_fallthru
        _
      %p359 = scmp.le.s32.totalorder 2, %s17
      // Predicated region
      $region49: #{tpu_custom_call.1} parent=5 // pred_check
        %p360 = pneg %p359
      $region50: #{tpu_custom_call.1} parent=5 // pred_check_branch
        %362 = sbr.rel (%p360) target = $region52
      $region51: #{tpu_custom_call.1} parent=5 // pred_region
        %s363 = ssub.s32 %s17, 2
        // Predicated region
        $region53: #{tpu_custom_call.1} parent=51 // pred_check
          %p364 = pneg %p156
        $region54: #{tpu_custom_call.1} parent=51 // pred_check_branch
          %366 = sbr.rel (%p364) target = $region56
        $region55: #{tpu_custom_call.1} parent=51 // pred_region
          %s367 = sand.u32 %s141, 1
          %s368 = scalar_lea.sflag [#allocation4], %s367
          %s369 = sand.u32 %s141, 1
          %s370 = smul.addr %s369, 4
          %s371 = scalar_lea.vmem [#allocation5], %s370
          %373 = dma.done %s368, 64
        $region56: #{tpu_custom_call.1} parent=51 // pred_fallthru
          _
      $region52: #{tpu_custom_call.1} parent=5 // pred_fallthru
        _
    $region6: #{tpu_custom_call.1} parent=1 // loop_footer
      %s21 = sadd.s32 1, %s17
    $region7: #{tpu_custom_call.1} parent=1 // loop_footer_branch
      %16 = sbr.rel target = $region3
    $region8: #{tpu_custom_call.1} parent=1 // loop_exit
      _
    %374 = vsyncpa [#allocation3], 1
    %s375 = scalar_lea.sflag [#allocation3], 1
    %376 = vsyncpa %s375, 1
    %377 = vsyncpa [#allocation4], 1
    %s378 = scalar_lea.sflag [#allocation4], 1
    %379 = vsyncpa %s378, 1

</llo_original>
